<compile_context>
chip_gen: v6e
topology: v6e:2x2x1
jax: 0.10.0
libtpu: 0.0.40
codegen_flags: <defaults>
</compile_context>

<pallas_src>
import functools

import jax
import jax.numpy as jnp
from jax.experimental import pallas as pl
from jax.experimental.pallas import tpu as pltpu

ALPHA = 0.5
CE_RATIO = 0.5
LANES = 128
SUBLANES = 8
MAX_BLOCK_ROWS = 512      # 512 x 128 f32 = 256 KiB per input block
NUM_CORES = 2             # megacore split on v7x; no-op elsewhere


def _combo_partial_kernel(x_ref, t_ref, o_ref, *, n_valid, n_inner,
                          block_rows, eps):
    c = pl.program_id(0)          # "parallel" axis (TensorCore split)
    i = pl.program_id(1)          # "arbitrary" reduction axis

    @pl.when(i == 0)
    def _init():
        o_ref[...] = jnp.zeros_like(o_ref)

    x = x_ref[...].astype(jnp.float32)
    t = t_ref[...].astype(jnp.float32)

    # Global flat element index -> mask out pad elements and the (possibly
    # clamped / repeated) overhang block.  OOB reads of the last partial block
    # may contain garbage, so mask with where() before any arithmetic.
    block_elems = block_rows * LANES
    base = (c * n_inner + i) * block_elems
    row_ids = jax.lax.broadcasted_iota(jnp.int32, (block_rows, LANES), 0)
    lane_ids = jax.lax.broadcasted_iota(jnp.int32, (block_rows, LANES), 1)
    valid = (base + row_ids * LANES + lane_ids) < n_valid

    x = jnp.where(valid, x, 0.0)
    t = jnp.where(valid, t, 0.0)

    # Weighted cross-entropy term (matches the PyTorch expression exactly,
    # including the placement of (1 - ALPHA) inside the bracket).
    xc = jnp.clip(x, eps, 1.0 - eps)
    ce = -(ALPHA * (t * jnp.log(xc)
                    + (1.0 - ALPHA) * (1.0 - t) * jnp.log(1.0 - xc)))
    ce = jnp.where(valid, ce, 0.0)

    # Fold (block_rows, 128) -> (8, 128) with pure VPU adds (layout no-op
    # reshape: sublane axis split in multiples of 8).
    chunks = block_rows // SUBLANES

    def fold(v):
        return jnp.sum(v.reshape(chunks, SUBLANES, LANES), axis=0)

    # Output block is resident across the inner axis -> acts as accumulator.
    o_ref[0, 0] += fold(x * t)   # intersection
    o_ref[0, 1] += fold(x)       # sum(inputs)
    o_ref[0, 2] += fold(t)       # sum(targets)
    o_ref[0, 3] += fold(ce)      # sum(ce terms)


def combo_loss(inputs, targets, smooth=1.0, eps=1e-9):
    """Pallas implementation of ComboLoss.forward. Returns a scalar f32."""
    x = jnp.reshape(inputs, (-1,))
    t = jnp.reshape(targets, (-1,))
    if t.dtype == jnp.bool_:
        t = t.astype(jnp.float32)
    n = x.shape[0]

    # Pad only when n is not already a multiple of one (8,128) tile (< 1024
    # extra elements; pad values are masked in-kernel anyway).
    tile = SUBLANES * LANES
    n_pad = ((n + tile - 1) // tile) * tile
    if n_pad != n:
        x = jnp.pad(x, (0, n_pad - n))
        t = jnp.pad(t, (0, n_pad - n))

    rows = n_pad // LANES
    block_rows = min(MAX_BLOCK_ROWS, rows)
    n_blocks = pl.cdiv(rows, block_rows)
    n_inner = pl.cdiv(n_blocks, NUM_CORES)

    x2 = x.reshape(rows, LANES)
    t2 = t.reshape(rows, LANES)

    def in_map(c, i):
        # Clamp so overhang grid steps re-read the last block (fully masked
        # in-kernel via the global element index).
        return (jnp.minimum(c * n_inner + i, n_blocks - 1), 0)

    kernel = functools.partial(
        _combo_partial_kernel,
        n_valid=n, n_inner=n_inner, block_rows=block_rows, eps=float(eps))

    in_spec = pl.BlockSpec((block_rows, LANES), in_map)

    partials = pl.pallas_call(
        kernel,
        out_shape=jax.ShapeDtypeStruct(
            (NUM_CORES, 4, SUBLANES, LANES), jnp.float32),
        grid_spec=pltpu.PrefetchScalarGridSpec(
            num_scalar_prefetch=0,
            grid=(NUM_CORES, n_inner),
            in_specs=[in_spec, in_spec],
            out_specs=pl.BlockSpec((1, 4, SUBLANES, LANES),
                                   lambda c, i: (c, 0, 0, 0)),
        ),
        compiler_params=pltpu.CompilerParams(
            dimension_semantics=("parallel", "arbitrary")),
    )(x2, t2)

    # Tiny JAX epilogue: final cross-core / cross-lane reduction + scalar math.
    sums = jnp.sum(partials, axis=(0, 2, 3))         # (4,)
    inter, sx, st, sce = sums[0], sums[1], sums[2], sums[3]
    dice = (2.0 * inter + smooth) / (sx + st + smooth)
    weighted_ce = sce / n
    return CE_RATIO * weighted_ce - (1.0 - CE_RATIO) * dice


def combo_loss_ref(inputs, targets, smooth=1.0, eps=1e-9):
    """Pure-JAX reference mirroring the PyTorch forward."""
    x = jnp.reshape(inputs, (-1,)).astype(jnp.float32)
    t = jnp.reshape(targets, (-1,)).astype(jnp.float32)
    intersection = jnp.sum(x * t)
    dice = (2.0 * intersection + smooth) / (jnp.sum(x) + jnp.sum(t) + smooth)
    xc = jnp.clip(x, eps, 1.0 - eps)
    out = -(ALPHA * (t * jnp.log(xc)
                     + (1.0 - ALPHA) * (1.0 - t) * jnp.log(1.0 - xc)))
    weighted_ce = jnp.mean(out)
    return CE_RATIO * weighted_ce - (1.0 - CE_RATIO) * dice


if __name__ == "__main__":
    key = jax.random.PRNGKey(0)
    k1, k2 = jax.random.split(key)
    # NCHW example: batch=2, channels=4, spatial=16x16
    # (probabilities + binary targets)
    inputs = jax.random.uniform(k1, (2, 4, 16, 16), dtype=jnp.float32)
    targets = (jax.random.uniform(k2, (2, 4, 16, 16), dtype=jnp.float32) > 0.5
               ).astype(jnp.float32)

    loss_fn = jax.jit(combo_loss)
    got = jax.block_until_ready(loss_fn(inputs, targets))
    want = jax.block_until_ready(combo_loss_ref(inputs, targets))
    assert jnp.allclose(got, want, rtol=1e-5, atol=1e-6), (got, want)
    print("KERNEL_OK")
</pallas_src>

<mosaic_0001>
module attributes {stable_mosaic.version = 11 : i64} {
  func.func @_combo_partial_kernel(%arg0: i32, %arg1: i32, %arg2: memref<16x128xf32, #tpu.memory_space<vmem>>, %arg3: memref<16x128xf32, #tpu.memory_space<vmem>>, %arg4: memref<1x4x8x128xf32, #tpu.memory_space<vmem>>) attributes {dimension_semantics = [#tpu.dimension_semantics<parallel>, #tpu.dimension_semantics<arbitrary>], iteration_bounds = array<i64: 2, 1>, scalar_prefetch = 0 : i64, scratch_operands = 0 : i64, tpu.core_type = #tpu.core_type<tc>, window_params = [{transform_indices = @transform_0, window_bounds = array<i64: 16, 128>}, {transform_indices = @transform_1, window_bounds = array<i64: 16, 128>}, {transform_indices = @transform_2, window_bounds = array<i64: 1, 4, 8, 128>}]} {
    %c0_i32 = arith.constant 0 : i32
    %0 = arith.cmpi eq, %arg1, %c0_i32 : i32
    %1 = arith.extui %0 : i1 to i32
    %c0_i32_0 = arith.constant 0 : i32
    %2 = arith.cmpi ne, %1, %c0_i32_0 : i32
    scf.if %2 {
      %cst_47 = arith.constant 0.000000e+00 : f32
      %75 = vector.broadcast %cst_47 : f32 to vector<1x4x8x128xf32>
      %c0_48 = arith.constant 0 : index
      %c0_49 = arith.constant 0 : index
      %c0_50 = arith.constant 0 : index
      %c0_51 = arith.constant 0 : index
      %76 = vector.load %arg4[%c0_48, %c0_49, %c0_50, %c0_51] : memref<1x4x8x128xf32, #tpu.memory_space<vmem>>, vector<1x4x8x128xf32>
      tpu.vector_store %arg4[%c0_48, %c0_49, %c0_50, %c0_51], %75 {strides = array<i32>} : memref<1x4x8x128xf32, #tpu.memory_space<vmem>>, vector<1x4x8x128xf32>,
    } else {
    }
    %c0 = arith.constant 0 : index
    %c0_1 = arith.constant 0 : index
    %3 = vector.load %arg2[%c0, %c0_1] : memref<16x128xf32, #tpu.memory_space<vmem>>, vector<16x128xf32>
    %c0_2 = arith.constant 0 : index
    %c0_3 = arith.constant 0 : index
    %4 = vector.load %arg3[%c0_2, %c0_3] : memref<16x128xf32, #tpu.memory_space<vmem>>, vector<16x128xf32>
    %c1_i32 = arith.constant 1 : i32
    %5 = arith.muli %arg0, %c1_i32 : i32
    %6 = arith.addi %5, %arg1 : i32
    %c2048_i32 = arith.constant 2048 : i32
    %7 = arith.muli %6, %c2048_i32 : i32
    %8 = tpu.iota {dimensions = array<i32: 0>} : vector<16x128xi32>
    %9 = tpu.iota {dimensions = array<i32: 1>} : vector<16x128xi32>
    %c128_i32 = arith.constant 128 : i32
    %10 = vector.broadcast %c128_i32 : i32 to vector<16x128xi32>
    %11 = arith.muli %8, %10 : vector<16x128xi32>
    %12 = vector.broadcast %7 : i32 to vector<16x128xi32>
    %13 = arith.addi %12, %11 : vector<16x128xi32>
    %14 = arith.addi %13, %9 : vector<16x128xi32>
    %c2048_i32_4 = arith.constant 2048 : i32
    %15 = vector.broadcast %c2048_i32_4 : i32 to vector<16x128xi32>
    %16 = arith.cmpi slt, %14, %15 : vector<16x128xi32>
    %cst = arith.constant 0.000000e+00 : f32
    %17 = vector.broadcast %cst : f32 to vector<16x128xf32>
    %18 = arith.select %16, %3, %17 : vector<16x128xi1>, vector<16x128xf32>
    %cst_5 = arith.constant 0.000000e+00 : f32
    %19 = vector.broadcast %cst_5 : f32 to vector<16x128xf32>
    %20 = arith.select %16, %4, %19 : vector<16x128xi1>, vector<16x128xf32>
    %cst_6 = arith.constant 9.99999971E-10 : f32
    %cst_7 = arith.constant 1.000000e+00 : f32
    %21 = vector.broadcast %cst_6 : f32 to vector<16x128xf32>
    %22 = arith.maximumf %21, %18 : vector<16x128xf32>
    %23 = vector.broadcast %cst_7 : f32 to vector<16x128xf32>
    %24 = arith.minimumf %23, %22 : vector<16x128xf32>
    %25 = math.log %24 : vector<16x128xf32>
    %26 = arith.mulf %20, %25 : vector<16x128xf32>
    %cst_8 = arith.constant 1.000000e+00 : f32
    %27 = vector.broadcast %cst_8 : f32 to vector<16x128xf32>
    %28 = arith.subf %27, %20 : vector<16x128xf32>
    %cst_9 = arith.constant 5.000000e-01 : f32
    %29 = vector.broadcast %cst_9 : f32 to vector<16x128xf32>
    %30 = arith.mulf %29, %28 : vector<16x128xf32>
    %cst_10 = arith.constant 1.000000e+00 : f32
    %31 = vector.broadcast %cst_10 : f32 to vector<16x128xf32>
    %32 = arith.subf %31, %24 : vector<16x128xf32>
    %33 = math.log %32 : vector<16x128xf32>
    %34 = arith.mulf %30, %33 : vector<16x128xf32>
    %35 = arith.addf %26, %34 : vector<16x128xf32>
    %cst_11 = arith.constant 5.000000e-01 : f32
    %36 = vector.broadcast %cst_11 : f32 to vector<16x128xf32>
    %37 = arith.mulf %36, %35 : vector<16x128xf32>
    %cst_12 = arith.constant 0.000000e+00 : f32
    %38 = vector.broadcast %cst_12 : f32 to vector<16x128xf32>
    %39 = arith.subf %38, %37 : vector<16x128xf32>
    %cst_13 = arith.constant 0.000000e+00 : f32
    %40 = vector.broadcast %cst_13 : f32 to vector<16x128xf32>
    %41 = arith.select %16, %39, %40 : vector<16x128xi1>, vector<16x128xf32>
    %c0_14 = arith.constant 0 : index
    %c0_15 = arith.constant 0 : index
    %c0_16 = arith.constant 0 : index
    %c0_17 = arith.constant 0 : index
    %42 = vector.load %arg4[%c0_14, %c0_15, %c0_16, %c0_17] : memref<1x4x8x128xf32, #tpu.memory_space<vmem>>, vector<1x1x8x128xf32>
    %43 = vector.shape_cast %42 : vector<1x1x8x128xf32> to vector<8x128xf32>
    %44 = arith.mulf %18, %20 : vector<16x128xf32>
    %45 = vector.shape_cast %44 : vector<16x128xf32> to vector<2x8x128xf32>
    %cst_18 = arith.constant dense<0.000000e+00> : vector<8x128xf32>
    %46 = vector.multi_reduction <add>, %45, %cst_18 [0] : vector<2x8x128xf32> to vector<8x128xf32>
    %47 = arith.addf %43, %46 : vector<8x128xf32>
    %c0_19 = arith.constant 0 : index
    %c0_20 = arith.constant 0 : index
    %c0_21 = arith.constant 0 : index
    %c0_22 = arith.constant 0 : index
    %48 = vector.load %arg4[%c0_19, %c0_20, %c0_21, %c0_22] : memref<1x4x8x128xf32, #tpu.memory_space<vmem>>, vector<1x1x8x128xf32>
    %49 = vector.shape_cast %48 : vector<1x1x8x128xf32> to vector<8x128xf32>
    %50 = vector.shape_cast %47 : vector<8x128xf32> to vector<1x1x8x128xf32>
    tpu.vector_store %arg4[%c0_19, %c0_20, %c0_21, %c0_22], %50 {strides = array<i32>} : memref<1x4x8x128xf32, #tpu.memory_space<vmem>>, vector<1x1x8x128xf32>,
    %c0_23 = arith.constant 0 : index
    %c1 = arith.constant 1 : index
    %c0_24 = arith.constant 0 : index
    %c0_25 = arith.constant 0 : index
    %51 = vector.load %arg4[%c0_23, %c1, %c0_24, %c0_25] : memref<1x4x8x128xf32, #tpu.memory_space<vmem>>, vector<1x1x8x128xf32>
    %52 = vector.shape_cast %51 : vector<1x1x8x128xf32> to vector<8x128xf32>
    %53 = vector.shape_cast %18 : vector<16x128xf32> to vector<2x8x128xf32>
    %cst_26 = arith.constant dense<0.000000e+00> : vector<8x128xf32>
    %54 = vector.multi_reduction <add>, %53, %cst_26 [0] : vector<2x8x128xf32> to vector<8x128xf32>
    %55 = arith.addf %52, %54 : vector<8x128xf32>
    %c0_27 = arith.constant 0 : index
    %c1_28 = arith.constant 1 : index
    %c0_29 = arith.constant 0 : index
    %c0_30 = arith.constant 0 : index
    %56 = vector.load %arg4[%c0_27, %c1_28, %c0_29, %c0_30] : memref<1x4x8x128xf32, #tpu.memory_space<vmem>>, vector<1x1x8x128xf32>
    %57 = vector.shape_cast %56 : vector<1x1x8x128xf32> to vector<8x128xf32>
    %58 = vector.shape_cast %55 : vector<8x128xf32> to vector<1x1x8x128xf32>
    tpu.vector_store %arg4[%c0_27, %c1_28, %c0_29, %c0_30], %58 {strides = array<i32>} : memref<1x4x8x128xf32, #tpu.memory_space<vmem>>, vector<1x1x8x128xf32>,
    %c0_31 = arith.constant 0 : index
    %c2 = arith.constant 2 : index
    %c0_32 = arith.constant 0 : index
    %c0_33 = arith.constant 0 : index
    %59 = vector.load %arg4[%c0_31, %c2, %c0_32, %c0_33] : memref<1x4x8x128xf32, #tpu.memory_space<vmem>>, vector<1x1x8x128xf32>
    %60 = vector.shape_cast %59 : vector<1x1x8x128xf32> to vector<8x128xf32>
    %61 = vector.shape_cast %20 : vector<16x128xf32> to vector<2x8x128xf32>
    %cst_34 = arith.constant dense<0.000000e+00> : vector<8x128xf32>
    %62 = vector.multi_reduction <add>, %61, %cst_34 [0] : vector<2x8x128xf32> to vector<8x128xf32>
    %63 = arith.addf %60, %62 : vector<8x128xf32>
    %c0_35 = arith.constant 0 : index
    %c2_36 = arith.constant 2 : index
    %c0_37 = arith.constant 0 : index
    %c0_38 = arith.constant 0 : index
    %64 = vector.load %arg4[%c0_35, %c2_36, %c0_37, %c0_38] : memref<1x4x8x128xf32, #tpu.memory_space<vmem>>, vector<1x1x8x128xf32>
    %65 = vector.shape_cast %64 : vector<1x1x8x128xf32> to vector<8x128xf32>
    %66 = vector.shape_cast %63 : vector<8x128xf32> to vector<1x1x8x128xf32>
    tpu.vector_store %arg4[%c0_35, %c2_36, %c0_37, %c0_38], %66 {strides = array<i32>} : memref<1x4x8x128xf32, #tpu.memory_space<vmem>>, vector<1x1x8x128xf32>,
    %c0_39 = arith.constant 0 : index
    %c3 = arith.constant 3 : index
    %c0_40 = arith.constant 0 : index
    %c0_41 = arith.constant 0 : index
    %67 = vector.load %arg4[%c0_39, %c3, %c0_40, %c0_41] : memref<1x4x8x128xf32, #tpu.memory_space<vmem>>, vector<1x1x8x128xf32>
    %68 = vector.shape_cast %67 : vector<1x1x8x128xf32> to vector<8x128xf32>
    %69 = vector.shape_cast %41 : vector<16x128xf32> to vector<2x8x128xf32>
    %cst_42 = arith.constant dense<0.000000e+00> : vector<8x128xf32>
    %70 = vector.multi_reduction <add>, %69, %cst_42 [0] : vector<2x8x128xf32> to vector<8x128xf32>
    %71 = arith.addf %68, %70 : vector<8x128xf32>
    %c0_43 = arith.constant 0 : index
    %c3_44 = arith.constant 3 : index
    %c0_45 = arith.constant 0 : index
    %c0_46 = arith.constant 0 : index
    %72 = vector.load %arg4[%c0_43, %c3_44, %c0_45, %c0_46] : memref<1x4x8x128xf32, #tpu.memory_space<vmem>>, vector<1x1x8x128xf32>
    %73 = vector.shape_cast %72 : vector<1x1x8x128xf32> to vector<8x128xf32>
    %74 = vector.shape_cast %71 : vector<8x128xf32> to vector<1x1x8x128xf32>
    tpu.vector_store %arg4[%c0_43, %c3_44, %c0_45, %c0_46], %74 {strides = array<i32>} : memref<1x4x8x128xf32, #tpu.memory_space<vmem>>, vector<1x1x8x128xf32>,
    return
  }
  func.func @transform_0(%arg0: i32, %arg1: i32) -> (i32, i32) {
    %c1_i32 = arith.constant 1 : i32
    %0 = arith.muli %arg0, %c1_i32 : i32
    %1 = arith.addi %0, %arg1 : i32
    %c0_i32 = arith.constant 0 : i32
    %2 = arith.minsi %1, %c0_i32 : i32
    %c0_i32_0 = arith.constant 0 : i32
    %c0_i32_1 = arith.constant 0 : i32
    return %2, %c0_i32_0 : i32, i32
  }
  func.func @transform_1(%arg0: i32, %arg1: i32) -> (i32, i32) {
    %c1_i32 = arith.constant 1 : i32
    %0 = arith.muli %arg0, %c1_i32 : i32
    %1 = arith.addi %0, %arg1 : i32
    %c0_i32 = arith.constant 0 : i32
    %2 = arith.minsi %1, %c0_i32 : i32
    %c0_i32_0 = arith.constant 0 : i32
    %c0_i32_1 = arith.constant 0 : i32
    return %2, %c0_i32_0 : i32, i32
  }
  func.func @transform_2(%arg0: i32, %arg1: i32) -> (i32, i32, i32, i32) {
    %c0_i32 = arith.constant 0 : i32
    %c0_i32_0 = arith.constant 0 : i32
    %c0_i32_1 = arith.constant 0 : i32
    %c0_i32_2 = arith.constant 0 : i32
    return %arg0, %c0_i32, %c0_i32_0, %c0_i32_1 : i32, i32, i32, i32
  }
}

</mosaic_0001>

<llo_original>
// kernel: combo_loss.1
$region0: #{combo_loss.1}
  #allocation0 [shape = 'u32[]', space=smem, size = 0x4, offset = 0x4, fixed_abs, tag = 'smem constant byte address 0x4 - core index']
  #allocation1 [shape = 'u32[144,128]{1,0:T(1,128)}', space=vmem, size = 0x12000, scoped, tag = 'internal scratch']
  %s0 = inlined_call_operand.vmem [shape: f32[16,128], index: 0, kind: input, shape index: {}]
  %s1 = inlined_call_operand.vmem [shape: f32[16,128], index: 1, kind: input, shape index: {}]
  %s2 = inlined_call_operand.vmem [shape: f32[2,4,8,128], index: 2, kind: output, shape index: {}]
  %s3 = sld [smem:[#allocation0]]
  $region45: #{combo_loss.1} parent=0
    _
  %s5 = ssub.s32 1, %s3
  %s6 = scalar_select 0, %s5, %s3
  loop: start=0, step=1, limit=4
  $region2: #{combo_loss.1} parent=0 // loop_pre_header
    _
  $region3: #{combo_loss.1} parent=0 // loop_header
    %s8 = sphi 0, %s12
    %p9 = scmp.ge.s32.totalorder %s8, 4
    %s15 = sphi 0, %s27
    %s16 = sphi 0, %s23
    %s17 = sphi 0, %s15
    %s18 = sphi 0, %s16
    %s19 = sphi 0, %s17
    %s20 = sphi 0, %s18
    %s36 = sphi 0, %s38
    %s39 = sphi 0, %s36
    %s40 = sphi 0, %s39
    %s56 = sphi 0, %s40
    %s68 = sphi 0, %s70
    %s71 = sphi 0, %s68
    %s72 = sphi 0, %s71
    %s88 = sphi 0, %s72
    %s94 = sphi 0, %s96
    %s97 = sphi 0, %s94
    %s98 = sphi 0, %s97
    %s114 = sphi 0, %s98
  $region4: #{combo_loss.1} parent=0 // loop_header_branch
    %11 = sbr.rel (%p9) target = $region8
  $region5: #{combo_loss.1} parent=0 // loop_body
    %s13 = ssub.s32 %s8, 1
    %s14 = ssub.s32 %s8, 2
    %s21 = sadd.s32 1, %s16
    %p22 = scmp.ge.s32.totalorder %s21, 1
    %s23 = scalar_select %p22, 0, %s21
    %s24 = sadd.s32 1, %s15
    %s25 = scalar_select %p22, %s24, %s15
    %p26 = scmp.ge.s32.totalorder %s25, 2
    %s27 = scalar_select %p26, 0, %s25
    %s28 = sadd.s32 %s15, %s16
    %p29 = scmp.lt.s32.totalorder %s28, 0
    %s30 = scalar_select %p29, %s28, 0
    %s31 = sadd.s32 %s27, %s23
    %p32 = scmp.lt.s32.totalorder %s31, 0
    %s33 = scalar_select %p32, %s31, 0
    %s34 = ssub.s32 %s30, %s33
    %p35 = scmp.eq.s32.totalorder %s34, 0
    %s37 = sadd.s32 %s36, 1
    %s38 = scalar_select %p35, %s36, %s37
    %p41 = pneg %p35
    %p42 = scmp.eq.s32.totalorder %s8, 1
    %p43 = por %p41, %p42
    %p44 = scmp.ne.s32.totalorder %s36, %s39
    %p45 = scmp.eq.s32.totalorder %s8, 0
    %p46 = por %p44, %p45
    %p47 = scmp.ne.s32.totalorder %s36, %s39
    %p48 = scmp.eq.s32.totalorder %s13, 1
    %p49 = por %p47, %p48
    %p50 = scmp.ne.s32.totalorder %s39, %s40
    %p51 = scmp.eq.s32.totalorder %s13, 0
    %p52 = por %p50, %p51
    %p53 = scmp.ne.s32.totalorder %s39, %s40
    %p54 = scmp.eq.s32.totalorder %s14, 1
    %p55 = por %p53, %p54
    %p57 = scmp.ne.s32.totalorder %s40, %s56
    %p58 = scmp.eq.s32.totalorder %s14, 0
    %p59 = por %p57, %p58
    %s60 = sadd.s32 %s15, %s16
    %p61 = scmp.lt.s32.totalorder %s60, 0
    %s62 = scalar_select %p61, %s60, 0
    %s63 = sadd.s32 %s27, %s23
    %p64 = scmp.lt.s32.totalorder %s63, 0
    %s65 = scalar_select %p64, %s63, 0
    %s66 = ssub.s32 %s62, %s65
    %p67 = scmp.eq.s32.totalorder %s66, 0
    %s69 = sadd.s32 %s68, 1
    %s70 = scalar_select %p67, %s68, %s69
    %p73 = pneg %p67
    %p74 = scmp.eq.s32.totalorder %s8, 1
    %p75 = por %p73, %p74
    %p76 = scmp.ne.s32.totalorder %s68, %s71
    %p77 = scmp.eq.s32.totalorder %s8, 0
    %p78 = por %p76, %p77
    %p79 = scmp.ne.s32.totalorder %s68, %s71
    %p80 = scmp.eq.s32.totalorder %s13, 1
    %p81 = por %p79, %p80
    %p82 = scmp.ne.s32.totalorder %s71, %s72
    %p83 = scmp.eq.s32.totalorder %s13, 0
    %p84 = por %p82, %p83
    %p85 = scmp.ne.s32.totalorder %s71, %s72
    %p86 = scmp.eq.s32.totalorder %s14, 1
    %p87 = por %p85, %p86
    %p89 = scmp.ne.s32.totalorder %s72, %s88
    %p90 = scmp.eq.s32.totalorder %s14, 0
    %p91 = por %p89, %p90
    %s92 = ssub.s32 %s15, %s27
    %p93 = scmp.eq.s32.totalorder %s92, 0
    %s95 = sadd.s32 %s94, 1
    %s96 = scalar_select %p93, %s94, %s95
    %p99 = pneg %p93
    %p100 = scmp.eq.s32.totalorder %s8, 1
    %p101 = por %p99, %p100
    %p102 = scmp.ne.s32.totalorder %s94, %s97
    %p103 = scmp.eq.s32.totalorder %s8, 0
    %p104 = por %p102, %p103
    %p105 = scmp.ne.s32.totalorder %s94, %s97
    %p106 = scmp.eq.s32.totalorder %s13, 1
    %p107 = por %p105, %p106
    %p108 = scmp.ne.s32.totalorder %s97, %s98
    %p109 = scmp.eq.s32.totalorder %s13, 0
    %p110 = por %p108, %p109
    %p111 = scmp.ne.s32.totalorder %s97, %s98
    %p112 = scmp.eq.s32.totalorder %s14, 1
    %p113 = por %p111, %p112
    %p115 = scmp.ne.s32.totalorder %s98, %s114
    %p116 = scmp.eq.s32.totalorder %s14, 0
    %p117 = por %p115, %p116
    %p118 = scmp.le.s32.totalorder 1, %s8
    %p119 = scmp.lt.s32.totalorder %s8, 3
    %p120 = pnand %p118, %p119
    %p121 = pneg %p120
    // Predicated region
    $region9: #{combo_loss.1} parent=5 // pred_check
      _
    $region10: #{combo_loss.1} parent=5 // pred_check_branch
      %123 = sbr.rel (%p120) target = $region12
    $region11: #{combo_loss.1} parent=5 // pred_region
      %s124 = ssub.s32 %s8, 1
    $region12: #{combo_loss.1} parent=5 // pred_fallthru
      _
    %p125 = scmp.lt.s32.totalorder %s8, 2
    // Predicated region
    $region13: #{combo_loss.1} parent=5 // pred_check
      %p126 = pneg %p125
    $region14: #{combo_loss.1} parent=5 // pred_check_branch
      %128 = sbr.rel (%p126) target = $region16
    $region15: #{combo_loss.1} parent=5 // pred_region
      // Predicated region
      $region17: #{combo_loss.1} parent=15 // pred_check
        %p129 = pneg %p46
      $region18: #{combo_loss.1} parent=15 // pred_check_branch
        %131 = sbr.rel (%p129) target = $region20
      $region19: #{combo_loss.1} parent=15 // pred_region
        %s132 = sadd.s32 %s15, %s16
        %p133 = scmp.lt.s32.totalorder %s132, 0
        %s134 = scalar_select %p133, %s132, 0
        %s135 = smul.u32 2, %s134
        %p136 = scmp.lt.s32.totalorder %s135, 1
        %s137 = scalar_select %p136, %s135, 1
        %s138 = smul.addr %s137, 8
        %s139 = scalar_lea.vmem %s0, %s138
        %s140 = sadd.s32 %s15, %s16
        %p141 = scmp.lt.s32.totalorder %s140, 0
        %s142 = scalar_select %p141, %s140, 0
        %s143 = smul.u32 2, %s142
      $region20: #{combo_loss.1} parent=15 // pred_fallthru
        _
      // Predicated region
      $region21: #{combo_loss.1} parent=15 // pred_check
        %p144 = pneg %p78
      $region22: #{combo_loss.1} parent=15 // pred_check_branch
        %146 = sbr.rel (%p144) target = $region24
      $region23: #{combo_loss.1} parent=15 // pred_region
        %s147 = sadd.s32 %s15, %s16
        %p148 = scmp.lt.s32.totalorder %s147, 0
        %s149 = scalar_select %p148, %s147, 0
        %s150 = smul.u32 2, %s149
        %p151 = scmp.lt.s32.totalorder %s150, 1
        %s152 = scalar_select %p151, %s150, 1
        %s153 = smul.addr %s152, 8
        %s154 = scalar_lea.vmem %s1, %s153
        %s155 = sadd.s32 %s15, %s16
        %p156 = scmp.lt.s32.totalorder %s155, 0
        %s157 = scalar_select %p156, %s155, 0
        %s158 = smul.u32 2, %s157
      $region24: #{combo_loss.1} parent=15 // pred_fallthru
        _
    $region16: #{combo_loss.1} parent=5 // pred_fallthru
      _
    %p159 = scmp.le.s32.totalorder 1, %s8
    %p160 = scmp.lt.s32.totalorder %s8, 3
    %p161 = pnand %p159, %p160
    %p162 = pneg %p161
    // Predicated region
    $region25: #{combo_loss.1} parent=5 // pred_check
      _
    $region26: #{combo_loss.1} parent=5 // pred_check_branch
      %164 = sbr.rel (%p161) target = $region28
    $region27: #{combo_loss.1} parent=5 // pred_region
      %s165 = ssub.s32 %s8, 1
      %s166 = sadd.s32 %s17, %s18
      %p167 = scmp.lt.s32.totalorder %s166, 0
      %s168 = scalar_select %p167, %s166, 0
      %s169 = smul.u32 2, %s168
      %p170 = scmp.lt.s32.totalorder %s169, 1
      %s171 = scalar_select %p170, %s169, 1
      %s172 = smul.addr %s171, 8
      %s173 = scalar_lea.vmem %s0, %s172
      %p174 = pneg %p52
      %p175 = pneg %p49
      %s176 = sadd.s32 %s17, %s18
      %p177 = scmp.lt.s32.totalorder %s176, 0
      %s178 = scalar_select %p177, %s176, 0
      %s179 = smul.u32 2, %s178
      %p180 = scmp.lt.s32.totalorder %s179, 1
      %s181 = scalar_select %p180, %s179, 1
      %s182 = smul.addr %s181, 8
      %s183 = scalar_lea.vmem %s1, %s182
      %p184 = pneg %p84
      %p185 = pneg %p81
      %p186 = pneg %p110
      %p187 = pneg %p107
      %p188 = scmp.lt.s32.totalorder %s17, 1
      %s189 = scalar_select %p188, %s17, 1
      %s190 = smul.addr %s189, 4
      %s191 = smul.addr %s190, 8
      %s192 = scalar_lea.vmem %s2, %s191
      %s193 = sadd.s32 %s17, %s18
      %p194 = scmp.lt.s32.totalorder %s193, 0
      %s195 = scalar_select %p194, %s193, 0
      %s196 = smul.u32 2, %s195
      %p197 = scmp.lt.s32.totalorder %s196, 1
      %s198 = scalar_select %p197, %s196, 1
      %s199 = smul.addr %s198, 8
      %s200 = scalar_lea.vmem %s0, %s199
      %s201 = sadd.s32 %s17, %s18
      %p202 = scmp.lt.s32.totalorder %s201, 0
      %s203 = scalar_select %p202, %s201, 0
      %s204 = smul.u32 2, %s203
      %s205 = sadd.s32 %s17, %s18
      %p206 = scmp.lt.s32.totalorder %s205, 0
      %s207 = scalar_select %p206, %s205, 0
      %s208 = smul.u32 2, %s207
      %p209 = scmp.lt.s32.totalorder %s208, 1
      %s210 = scalar_select %p209, %s208, 1
      %s211 = smul.addr %s210, 8
      %s212 = scalar_lea.vmem %s1, %s211
      %s213 = sadd.s32 %s17, %s18
      %p214 = scmp.lt.s32.totalorder %s213, 0
      %s215 = scalar_select %p214, %s213, 0
      %s216 = smul.u32 2, %s215
      %p217 = scmp.lt.s32.totalorder %s17, 1
      %s218 = scalar_select %p217, %s17, 1
      %s219 = smul.addr %s218, 4
      %s220 = smul.addr %s219, 8
      %s221 = scalar_lea.vmem %s2, %s220
      %p222 = scmp.eq.s32.totalorder %s18, 0
      // Predicated region
      $region29: #{combo_loss.1} parent=27 // pred_check
        %p223 = pneg %p222
      $region30: #{combo_loss.1} parent=27 // pred_check_branch
        %225 = sbr.rel (%p223) target = $region32
      $region31: #{combo_loss.1} parent=27 // pred_region
        %226 = vst [vmem:[%s221] sm:$0xff] 0.0
        %227 = vst [vmem:[%s221 + $0x8] sm:$0xff] 0.0
        %228 = vst [vmem:[%s221 + $0x10] sm:$0xff] 0.0
        %229 = vst [vmem:[%s221 + $0x18] sm:$0xff] 0.0
      $region32: #{combo_loss.1} parent=27 // pred_fallthru
        _
      %v230 = vld [vmem:[%s200] sm:$0xff]
      %v231 = vld [vmem:[%s200 + $0x8] sm:$0xff]
      %v232 = vld [vmem:[%s212] sm:$0xff]
      %v233 = vld [vmem:[%s212 + $0x8] sm:$0xff]
      %s234 = sadd.s32 %s17, %s18
      %s235 = smul.u32 %s234, 2048
      %v236 = vlaneseq
      %v237 = vshrl.u32 %v236, 7
      %v238 = vadd.s32 %v237, 8
      %v239 = vlaneseq
      %v240 = vand.u32 %v239, 127
      %v241 = vmul.u32 %v237, 128
      %v242 = vmul.u32 %v238, 128
      %v243 = vstv %s235
      %v244 = vadd.s32 %v243, %v241
      %v245 = vadd.s32 %v243, %v242
      %v246 = vadd.s32 %v244, %v240
      %v247 = vadd.s32 %v245, %v240
      %vm248 = vcmp.lt.s32.totalorder %v246, 2048
      %vm249 = vcmp.lt.s32.totalorder %v247, 2048
      %v250 = vsel %vm248, %v230, 0.0
      %v251 = vsel %vm249, %v231, 0.0
      %v252 = vsel %vm248, %v232, 0.0
      %v253 = vsel %vm249, %v233, 0.0
      %v254 = vmax.f32 %v250, 1e-09
      %v255 = vmax.f32 %v251, 1e-09
      %v256 = vmin.f32 %v254, 1.0
      %v257 = vmin.f32 %v255, 1.0
      %v258 = vlog2.pop %v256
      %v259 = vmul.f32 %v258, 0.6931472
      %v260 = vlog2.pop %v257
      %v261 = vmul.f32 %v260, 0.6931472
      %v262 = vmul.f32 %v252, %v259
      %v263 = vmul.f32 %v253, %v261
      %v264 = vsub.f32 1.0, %v252
      %v265 = vsub.f32 1.0, %v253
      %v266 = vmul.f32 %v264, 0.5
      %v267 = vmul.f32 %v265, 0.5
      %v268 = vsub.f32 1.0, %v256
      %v269 = vsub.f32 1.0, %v257
      %v270 = vlog2.pop %v268
      %v271 = vmul.f32 %v270, 0.6931472
      %v272 = vlog2.pop %v269
      %v273 = vmul.f32 %v272, 0.6931472
      %v274 = vmul.f32 %v266, %v271
      %v275 = vmul.f32 %v267, %v273
      %v276 = vadd.f32 %v262, %v274
      %v277 = vadd.f32 %v263, %v275
      %v278 = vmul.f32 %v276, 0.5
      %v279 = vmul.f32 %v277, 0.5
      %v280 = vsub.f32 0.0, %v278
      %v281 = vsub.f32 0.0, %v279
      %v282 = vsel %vm248, %v280, 0.0
      %v283 = vsel %vm249, %v281, 0.0
      %v284 = vld [vmem:[%s221] sm:$0xff]
      %v285 = vmul.f32 %v250, %v252
      %v286 = vmul.f32 %v251, %v253
      %v287 = vadd.f32 %v285, %v286
      %v288 = vadd.f32 %v284, %v287
      %289 = vst [vmem:[%s221] sm:$0xff] %v288
      %s290 = scalar_lea.vmem %s221, 8
      %v291 = vld [vmem:[%s290] sm:$0xff]
      %v292 = vadd.f32 %v250, %v251
      %v293 = vadd.f32 %v291, %v292
      %294 = vst [vmem:[%s290] sm:$0xff] %v293
      %s295 = scalar_lea.vmem %s221, 16
      %v296 = vld [vmem:[%s295] sm:$0xff]
      %v297 = vadd.f32 %v252, %v253
      %v298 = vadd.f32 %v296, %v297
      %299 = vst [vmem:[%s295] sm:$0xff] %v298
      %s300 = scalar_lea.vmem %s221, 24
      %v301 = vld [vmem:[%s300] sm:$0xff]
      %v302 = vadd.f32 %v282, %v283
      %v303 = vadd.f32 %v301, %v302
      %304 = vst [vmem:[%s300] sm:$0xff] %v303
      %p305 = scmp.lt.s32.totalorder %s17, 1
      %s306 = scalar_select %p305, %s17, 1
      %s307 = smul.addr %s306, 4
      %s308 = smul.addr %s307, 8
      %s309 = scalar_lea.vmem %s2, %s308
      // Predicated region
      $region33: #{combo_loss.1} parent=27 // pred_check
        %p310 = pneg %p107
      $region34: #{combo_loss.1} parent=27 // pred_check_branch
        %312 = sbr.rel (%p310) target = $region36
      $region35: #{combo_loss.1} parent=27 // pred_region
        _
      $region36: #{combo_loss.1} parent=27 // pred_fallthru
        _
    $region28: #{combo_loss.1} parent=5 // pred_fallthru
      _
    %p313 = scmp.le.s32.totalorder 2, %s8
    // Predicated region
    $region37: #{combo_loss.1} parent=5 // pred_check
      %p314 = pneg %p313
    $region38: #{combo_loss.1} parent=5 // pred_check_branch
      %316 = sbr.rel (%p314) target = $region40
    $region39: #{combo_loss.1} parent=5 // pred_region
      %s317 = ssub.s32 %s8, 2
      // Predicated region
      $region41: #{combo_loss.1} parent=39 // pred_check
        %p318 = pneg %p113
      $region42: #{combo_loss.1} parent=39 // pred_check_branch
        %320 = sbr.rel (%p318) target = $region44
      $region43: #{combo_loss.1} parent=39 // pred_region
        %p321 = scmp.lt.s32.totalorder %s19, 1
        %s322 = scalar_select %p321, %s19, 1
        %s323 = smul.addr %s322, 4
        %s324 = smul.addr %s323, 8
        %s325 = scalar_lea.vmem %s2, %s324
      $region44: #{combo_loss.1} parent=39 // pred_fallthru
        _
    $region40: #{combo_loss.1} parent=5 // pred_fallthru
      _
  $region6: #{combo_loss.1} parent=0 // loop_footer
    %s12 = sadd.s32 1, %s8
  $region7: #{combo_loss.1} parent=0 // loop_footer_branch
    %7 = sbr.rel target = $region3
  $region8: #{combo_loss.1} parent=0 // loop_exit
    _

</llo_original>
